<compile_context>
chip_gen: v7x
topology: tpu7x:2x2x1
jax: 0.10.0
libtpu: 0.0.40
codegen_flags: <defaults>
</compile_context>

<pallas_src>
import math

import jax
import jax.numpy as jnp
from jax.experimental import pallas as pl
from jax.experimental.pallas import tpu as pltpu


def _concat_kernel(x_ref, y_ref, z_ref, o_ref):
    # Refs are 2-D (TILE_R, D_i) / (TILE_R, d_out) VMEM views.
    dx = x_ref.shape[-1]
    dy = y_ref.shape[-1]
    o_ref[:, 0:dx] = x_ref[...]
    o_ref[:, dx:dx + dy] = y_ref[...]
    o_ref[:, dx + dy:] = z_ref[...]


def _pick_row_tile(rows, bytes_per_row_double_buffered, pack):
    """Largest row tile (multiple of `pack`, or the full R) whose
    double-buffered working set stays under ~8 MiB."""
    budget = 8 * 1024 * 1024
    cap = budget // max(bytes_per_row_double_buffered, 1)
    cap = max(pack, (cap // pack) * pack)
    if rows <= cap:
        return rows                       # everything fits in one block
    # Prefer a tile that divides R evenly (no ragged trailing block).
    t = min(cap, (rows // pack) * pack)
    while t >= pack:
        if rows % t == 0:
            return t
        t -= pack
    return cap                            # rare: rely on Pallas edge-block masking


def concat_early(x, y, z):
    """Pallas equivalent of torch.cat([x, y, z], dim=-1)."""
    assert x.ndim >= 2 and y.ndim >= 2 and z.ndim >= 2, "expected >=2-D inputs"
    assert x.shape[:-1] == y.shape[:-1] == z.shape[:-1], "leading dims must match"
    assert x.dtype == y.dtype == z.dtype, "dtypes must match"

    lead = x.shape[:-1]
    rows = math.prod(lead)
    dx, dy, dz = x.shape[-1], y.shape[-1], z.shape[-1]
    d_out = dx + dy + dz
    itemsize = jnp.dtype(x.dtype).itemsize

    # Flatten leading dims -> one long row axis (free for contiguous arrays).
    x2 = x.reshape(rows, dx)
    y2 = y.reshape(rows, dy)
    z2 = z.reshape(rows, dz)

    # Sublane packing: 8 rows/vreg at 32-bit, 16 at 16-bit, 32 at 8-bit.
    pack = max(8, 32 // itemsize)
    # Double-buffered bytes per row across all streams: 2 * (inputs + output).
    bytes_per_row = 2 * (d_out + d_out) * itemsize
    tile_r = _pick_row_tile(rows, bytes_per_row, pack)

    grid = (pl.cdiv(rows, tile_r),)

    cost = pl.CostEstimate(
        flops=0,
        transcendentals=0,
        bytes_accessed=2 * rows * d_out * itemsize,  # read everything + write everything
    )

    out2 = pl.pallas_call(
        _concat_kernel,
        out_shape=jax.ShapeDtypeStruct((rows, d_out), x.dtype),
        grid_spec=pltpu.PrefetchScalarGridSpec(
            num_scalar_prefetch=0,
            grid=grid,
            in_specs=[
                pl.BlockSpec((tile_r, dx), lambda i: (i, 0)),
                pl.BlockSpec((tile_r, dy), lambda i: (i, 0)),
                pl.BlockSpec((tile_r, dz), lambda i: (i, 0)),
            ],
            out_specs=pl.BlockSpec((tile_r, d_out), lambda i: (i, 0)),
        ),
        compiler_params=pltpu.CompilerParams(
            dimension_semantics=("parallel",)),
        cost_estimate=cost,
    )(x2, y2, z2)

    return out2.reshape(*lead, d_out)


if __name__ == "__main__":
    key = jax.random.PRNGKey(0)
    kx, ky, kz = jax.random.split(key, 3)

    B, S = 2, 8
    x = jax.random.normal(kx, (B, S, 32), dtype=jnp.float32)
    y = jax.random.normal(ky, (B, S, 16), dtype=jnp.float32)
    z = jax.random.normal(kz, (B, S, 48), dtype=jnp.float32)

    out = concat_early(x, y, z)
    out = jax.block_until_ready(out)

    ref = jnp.concatenate([x, y, z], axis=-1)
    assert out.shape == ref.shape, (out.shape, ref.shape)
    assert jnp.array_equal(out, ref), "mismatch vs jnp.concatenate reference"

    print("KERNEL_OK")
</pallas_src>

<mosaic_0001>
module attributes {stable_mosaic.version = 11 : i64} {
  func.func @_concat_kernel(%arg0: i32, %arg1: memref<16x32xf32, #tpu.memory_space<vmem>>, %arg2: memref<16x16xf32, #tpu.memory_space<vmem>>, %arg3: memref<16x48xf32, #tpu.memory_space<vmem>>, %arg4: memref<16x96xf32, #tpu.memory_space<vmem>>) attributes {dimension_semantics = [#tpu.dimension_semantics<parallel>], iteration_bounds = array<i64: 1>, scalar_prefetch = 0 : i64, scratch_operands = 0 : i64, tpu.core_type = #tpu.core_type<tc>, window_params = [{transform_indices = @transform_0, window_bounds = array<i64: 16, 32>}, {transform_indices = @transform_1, window_bounds = array<i64: 16, 16>}, {transform_indices = @transform_2, window_bounds = array<i64: 16, 48>}, {transform_indices = @transform_3, window_bounds = array<i64: 16, 96>}]} {
    %c0 = arith.constant 0 : index
    %c0_0 = arith.constant 0 : index
    %0 = vector.load %arg1[%c0, %c0_0] : memref<16x32xf32, #tpu.memory_space<vmem>>, vector<16x32xf32>
    %c0_1 = arith.constant 0 : index
    %c0_2 = arith.constant 0 : index
    %1 = vector.load %arg4[%c0_1, %c0_2] : memref<16x96xf32, #tpu.memory_space<vmem>>, vector<16x32xf32>
    tpu.vector_store %arg4[%c0_1, %c0_2], %0 {strides = array<i32>} : memref<16x96xf32, #tpu.memory_space<vmem>>, vector<16x32xf32>,
    %c0_3 = arith.constant 0 : index
    %c0_4 = arith.constant 0 : index
    %2 = vector.load %arg2[%c0_3, %c0_4] : memref<16x16xf32, #tpu.memory_space<vmem>>, vector<16x16xf32>
    %c0_5 = arith.constant 0 : index
    %c32 = arith.constant 32 : index
    %3 = vector.load %arg4[%c0_5, %c32] : memref<16x96xf32, #tpu.memory_space<vmem>>, vector<16x16xf32>
    tpu.vector_store %arg4[%c0_5, %c32], %2 {strides = array<i32>} : memref<16x96xf32, #tpu.memory_space<vmem>>, vector<16x16xf32>,
    %c0_6 = arith.constant 0 : index
    %c0_7 = arith.constant 0 : index
    %4 = vector.load %arg3[%c0_6, %c0_7] : memref<16x48xf32, #tpu.memory_space<vmem>>, vector<16x48xf32>
    %c0_8 = arith.constant 0 : index
    %c48 = arith.constant 48 : index
    %5 = vector.load %arg4[%c0_8, %c48] : memref<16x96xf32, #tpu.memory_space<vmem>>, vector<16x48xf32>
    tpu.vector_store %arg4[%c0_8, %c48], %4 {strides = array<i32>} : memref<16x96xf32, #tpu.memory_space<vmem>>, vector<16x48xf32>,
    return
  }
  func.func @transform_0(%arg0: i32) -> (i32, i32) {
    %c0_i32 = arith.constant 0 : i32
    %c0_i32_0 = arith.constant 0 : i32
    return %arg0, %c0_i32 : i32, i32
  }
  func.func @transform_1(%arg0: i32) -> (i32, i32) {
    %c0_i32 = arith.constant 0 : i32
    %c0_i32_0 = arith.constant 0 : i32
    return %arg0, %c0_i32 : i32, i32
  }
  func.func @transform_2(%arg0: i32) -> (i32, i32) {
    %c0_i32 = arith.constant 0 : i32
    %c0_i32_0 = arith.constant 0 : i32
    return %arg0, %c0_i32 : i32, i32
  }
  func.func @transform_3(%arg0: i32) -> (i32, i32) {
    %c0_i32 = arith.constant 0 : i32
    %c0_i32_0 = arith.constant 0 : i32
    return %arg0, %c0_i32 : i32, i32
  }
}

</mosaic_0001>

<llo_original>
// kernel: tpu_custom_call.1
$region0: #{tpu_custom_call.1}
  #allocation0 [shape = 'u32[]', space=smem, size = 0x4, offset = 0x4, fixed_abs, tag = 'smem constant byte address 0x4 - core index']
  #allocation1 [shape = 'u32[144,128]{1,0:T(1,128)}', space=vmem, size = 0x12000, scoped, tag = 'internal scratch']
  %s0 = inlined_call_operand.hbm [shape: f32[16,32], index: 0, kind: input, shape index: {}]
  %s1 = inlined_call_operand.hbm [shape: f32[16,16], index: 1, kind: input, shape index: {}]
  %s2 = inlined_call_operand.hbm [shape: f32[16,48], index: 2, kind: input, shape index: {}]
  %s3 = inlined_call_operand.hbm [shape: f32[16,96], index: 3, kind: output, shape index: {}]
  %s4 = sld [smem:[#allocation0]]
  $region34: #{tpu_custom_call.1} parent=0
    _
  %s6 = ssub.s32 1, %s4
  %s7 = scalar_select 0, %s6, %s4
  $region1: #{tpu_custom_call.1} parent=0
    #allocation2 [shape = 'u8[8192]{0}', space=vmem, size = 0x2000, scoped, tag = 'input window, operand 0, single buffered']
    #allocation3 [shape = 's32[1]{0}', space=sflag, size = 0x4, scoped, tag = 'scoped memory for tpu_custom_call.1']
    #allocation4 [shape = 's32[1]{0}', space=sflag, size = 0x4, scoped, tag = 'scoped memory for tpu_custom_call.1']
    #allocation5 [shape = 'u8[8192]{0}', space=vmem, size = 0x2000, scoped, tag = 'input window, operand 1, single buffered']
    #allocation6 [shape = 's32[1]{0}', space=sflag, size = 0x4, scoped, tag = 'scoped memory for tpu_custom_call.1']
    #allocation7 [shape = 'u8[8192]{0}', space=vmem, size = 0x2000, scoped, tag = 'input window, operand 2, single buffered']
    #allocation8 [shape = 'u8[8192]{0}', space=vmem, size = 0x2000, scoped, tag = 'output window, operand 0, single buffered']
    %8 = vsyncpa [#allocation3], 0
    %9 = vsyncpa [#allocation6], 0
    %10 = vsyncpa [#allocation4], 0
    // Predicated region
    $region2: #{tpu_custom_call.1} parent=1 // pred_check
      _
    $region3: #{tpu_custom_call.1} parent=1 // pred_check_branch
      %12 = sbr.rel (0) target = $region5
    $region4: #{tpu_custom_call.1} parent=1 // pred_region
      %s14 = ssub.s32 256, 256
      %15 = vsyncadd [#allocation3], %s14
      %s16 = sshll.u32 [#allocation2], 4
      %s17 = int_to_ptr.vmem [resolvable:$true] %s16
      %22 = dma.hbm_to_vmem [thread:$0]  %s0, 256, %s17, [#allocation3], 128, 128, 8
    $region5: #{tpu_custom_call.1} parent=1 // pred_fallthru
      _
    // Predicated region
    $region6: #{tpu_custom_call.1} parent=1 // pred_check
      _
    $region7: #{tpu_custom_call.1} parent=1 // pred_check_branch
      %24 = sbr.rel (0) target = $region9
    $region8: #{tpu_custom_call.1} parent=1 // pred_region
      %s26 = ssub.s32 256, 256
      %27 = vsyncadd [#allocation6], %s26
      %s28 = sshll.u32 [#allocation5], 4
      %s29 = int_to_ptr.vmem [resolvable:$true] %s28
      %34 = dma.hbm_to_vmem [thread:$0]  %s1, 256, %s29, [#allocation6], 128, 128, 8
    $region9: #{tpu_custom_call.1} parent=1 // pred_fallthru
      _
    // Predicated region
    $region10: #{tpu_custom_call.1} parent=1 // pred_check
      _
    $region11: #{tpu_custom_call.1} parent=1 // pred_check_branch
      %36 = sbr.rel (0) target = $region13
    $region12: #{tpu_custom_call.1} parent=1 // pred_region
      %s38 = ssub.s32 256, 256
      %39 = vsyncadd [#allocation6], %s38
      %s40 = sshll.u32 [#allocation7], 4
      %s41 = int_to_ptr.vmem [resolvable:$true] %s40
      %46 = dma.hbm_to_vmem [thread:$0]  %s2, 256, %s41, [#allocation6], 128, 128, 8
    $region13: #{tpu_custom_call.1} parent=1 // pred_fallthru
      _
    // Predicated region
    $region14: #{tpu_custom_call.1} parent=1 // pred_check
      _
    $region15: #{tpu_custom_call.1} parent=1 // pred_check_branch
      %48 = sbr.rel (0) target = $region17
    $region16: #{tpu_custom_call.1} parent=1 // pred_region
      %49 = dma.done [#allocation3], 256
    $region17: #{tpu_custom_call.1} parent=1 // pred_fallthru
      _
    // Predicated region
    $region18: #{tpu_custom_call.1} parent=1 // pred_check
      _
    $region19: #{tpu_custom_call.1} parent=1 // pred_check_branch
      %51 = sbr.rel (0) target = $region21
    $region20: #{tpu_custom_call.1} parent=1 // pred_region
      %52 = dma.done [#allocation6], 256
    $region21: #{tpu_custom_call.1} parent=1 // pred_fallthru
      _
    // Predicated region
    $region22: #{tpu_custom_call.1} parent=1 // pred_check
      _
    $region23: #{tpu_custom_call.1} parent=1 // pred_check_branch
      %54 = sbr.rel (0) target = $region25
    $region24: #{tpu_custom_call.1} parent=1 // pred_region
      %55 = dma.done [#allocation6], 256
    $region25: #{tpu_custom_call.1} parent=1 // pred_fallthru
      _
    %v56 = vld [vmem:[#allocation2] sm:$0xff]
    %v57 = vld [vmem:[#allocation2 + $0x8] sm:$0xff]
    %vm58 = vcmask 261120
    %59 = vst.msk [vmem:[#allocation8] sm:$0xff] %vm58, %v56
    %60 = vst.msk [vmem:[#allocation8 + $0x8] sm:$0xff] %vm58, %v57
    %v61 = vld [vmem:[#allocation5] sm:$0xff]
    %v62 = vld [vmem:[#allocation5 + $0x8] sm:$0xff]
    %65 = vrot.lane.b32.xlu0 %v61, 32
    %v66 = vpop.permute.xlu0 %65
    %67 = vrot.lane.b32.xlu0 %v62, 32
    %v68 = vpop.permute.xlu0 %67
    %vm71 = vcmask 392448
    %72 = vst.msk [vmem:[#allocation8] sm:$0xff] %vm71, %v66
    %73 = vst.msk [vmem:[#allocation8 + $0x8] sm:$0xff] %vm71, %v68
    %v74 = vld [vmem:[#allocation7] sm:$0xff]
    %v75 = vld [vmem:[#allocation7 + $0x8] sm:$0xff]
    %78 = vrot.lane.b32.xlu0 %v74, 48
    %v79 = vpop.permute.xlu0 %78
    %80 = vrot.lane.b32.xlu0 %v75, 48
    %v81 = vpop.permute.xlu0 %80
    %vm84 = vcmask 785792
    %85 = vst.msk [vmem:[#allocation8] sm:$0xff] %vm84, %v79
    %86 = vst.msk [vmem:[#allocation8 + $0x8] sm:$0xff] %vm84, %v81
    // Predicated region
    $region26: #{tpu_custom_call.1} parent=1 // pred_check
      _
    $region27: #{tpu_custom_call.1} parent=1 // pred_check_branch
      %88 = sbr.rel (0) target = $region29
    $region28: #{tpu_custom_call.1} parent=1 // pred_region
      %s90 = ssub.s32 256, 256
      %91 = vsyncadd [#allocation4], %s90
      %s92 = sshll.u32 [#allocation8], 4
      %s93 = int_to_ptr.vmem [resolvable:$true] %s92
      %98 = dma.vmem_to_hbm [thread:$0]  %s93, 256, %s3, [#allocation4], 128, 128, 8
    $region29: #{tpu_custom_call.1} parent=1 // pred_fallthru
      _
    // Predicated region
    $region30: #{tpu_custom_call.1} parent=1 // pred_check
      _
    $region31: #{tpu_custom_call.1} parent=1 // pred_check_branch
      %100 = sbr.rel (0) target = $region33
    $region32: #{tpu_custom_call.1} parent=1 // pred_region
      %101 = dma.done [#allocation4], 256
    $region33: #{tpu_custom_call.1} parent=1 // pred_fallthru
      _
    %102 = vsyncpa [#allocation3], 1
    %103 = vsyncpa [#allocation6], 1
    %104 = vsyncpa [#allocation4], 1

</llo_original>
